<compile_context>
chip_gen: v6e
topology: v6e:2x2x1
jax: 0.10.0
libtpu: 0.0.40
codegen_flags: <defaults>
</compile_context>

<pallas_src>
import jax
import jax.numpy as jnp
from jax import lax
from jax.experimental import pallas as pl
from jax.experimental.pallas import tpu as pltpu

BN_EPS = 1e-5


# ----------------------------- Pallas kernel --------------------------------
def _ccbn_kernel(x_ref, y_ref, sw_ref, hw_ref, gamma_ref, beta_ref, o_ref):
    """Fused class-conditional BatchNorm2d on one channel tile.

    x_ref:     (B, CT, HW)  activations, native dtype (lane axis = HW)
    y_ref:     (B, Cin)     class embedding + noise chunk (f32)
    sw_ref:    (CT, Cin)    class_scale_transform weight tile (out, in)
    hw_ref:    (CT, Cin)    class_shift_transform weight tile (out, in)
    gamma_ref: (CT, 1)      BatchNorm2d affine weight tile
    beta_ref:  (CT, 1)      BatchNorm2d affine bias tile
    o_ref:     (B, CT, HW)  output, same dtype as x
    """
    B, CT, HW = x_ref.shape
    x = x_ref[...].astype(jnp.float32)
    n = float(B * HW)

    # Per-channel batch statistics, single pass (sum & sum-of-squares),
    # kept channel-on-sublane (CT, 1) so they combine with gamma/beta
    # without any relayout.
    sum_x = jnp.sum(jnp.sum(x, axis=0), axis=1, keepdims=True)        # (CT, 1)
    sum_xx = jnp.sum(jnp.sum(x * x, axis=0), axis=1, keepdims=True)   # (CT, 1)
    mean = sum_x / n
    var = jnp.maximum(sum_xx / n - mean * mean, 0.0)   # clamp: cancellation
    inv = lax.rsqrt(var + BN_EPS)                      # (CT, 1)

    # Class-conditional scale / shift: tiny MXU dots, y @ W^T (W is (out, in)).
    y = y_ref[...]
    dn = (((1,), (1,)), ((), ()))
    scale = 1.0 + lax.dot_general(y, sw_ref[...], dn,
                                  preferred_element_type=jnp.float32)  # (B, CT)
    shift = lax.dot_general(y, hw_ref[...], dn,
                            preferred_element_type=jnp.float32)        # (B, CT)

    # Fold BN affine + class conditioning into one per-(b, c) scale/offset:
    #   out = scale * (gamma * (x - mean) * inv + beta) + shift
    #       = eff_a * x + eff_b
    a_c = gamma_ref[...] * inv              # (CT, 1)
    b_c = beta_ref[...] - mean * a_c        # (CT, 1)
    scale3 = scale[:, :, None]              # (B, CT, 1)
    shift3 = shift[:, :, None]              # (B, CT, 1)
    eff_a = scale3 * a_c                    # (B, CT, 1)
    eff_b = scale3 * b_c + shift3           # (B, CT, 1)

    o_ref[...] = (eff_a * x + eff_b).astype(o_ref.dtype)


# ------------------------------- wrapper -------------------------------------
def _pick_c_tile(C, B, HW, itemsize):
    """Largest multiple-of-8 channel tile dividing C with ~2 MiB activation tile."""
    if C % 8 != 0:
        return C                      # single full-channel block (still legal)
    per_ch = B * HW * itemsize
    target = 2 * 1024 * 1024
    ct = min(C, max(8, (target // max(per_ch, 1)) // 8 * 8))
    while C % ct != 0:
        ct -= 8
    return ct


def class_conditional_batchnorm2d(x, y, scale_w, shift_w, bn_gamma, bn_beta,
                                  *, c_tile=None):
    """x: (B, C, H, W); y: (B, Cin); scale_w/shift_w: (Cin, C); gamma/beta: (C,)."""
    B, C, H, W = x.shape
    Cin = y.shape[1]
    HW = H * W

    if c_tile is None:
        c_tile = _pick_c_tile(C, B, HW, x.dtype.itemsize)
    assert C % c_tile == 0 and (c_tile % 8 == 0 or c_tile == C), (C, c_tile)
    nt = C // c_tile

    xr = x.reshape(B, C, HW)                        # native dtype, no extra pass
    sw_t = scale_w.astype(jnp.float32).T            # (C, Cin): channels on sublanes
    hw_t = shift_w.astype(jnp.float32).T            # (C, Cin)
    gamma = bn_gamma.astype(jnp.float32).reshape(C, 1)
    beta = bn_beta.astype(jnp.float32).reshape(C, 1)

    cost = pl.CostEstimate(
        flops=6 * B * C * HW + 4 * B * Cin * C,
        transcendentals=C,
        bytes_accessed=2 * B * C * HW * x.dtype.itemsize
                       + (2 * C * Cin + 2 * C + B * Cin) * 4,
    )

    out = pl.pallas_call(
        _ccbn_kernel,
        out_shape=jax.ShapeDtypeStruct((B, C, HW), x.dtype),
        grid=(nt,),
        in_specs=[
            pl.BlockSpec((B, c_tile, HW), lambda c: (0, c, 0)),
            pl.BlockSpec((B, Cin), lambda c: (0, 0)),
            pl.BlockSpec((c_tile, Cin), lambda c: (c, 0)),
            pl.BlockSpec((c_tile, Cin), lambda c: (c, 0)),
            pl.BlockSpec((c_tile, 1), lambda c: (c, 0)),
            pl.BlockSpec((c_tile, 1), lambda c: (c, 0)),
        ],
        out_specs=pl.BlockSpec((B, c_tile, HW), lambda c: (0, c, 0)),
        input_output_aliases={0: 0},
        compiler_params=pltpu.CompilerParams(
            dimension_semantics=("parallel",),
            vmem_limit_bytes=32 * 1024 * 1024),
        cost_estimate=cost,
    )(xr, y.astype(jnp.float32), sw_t, hw_t, gamma, beta)
    return out.reshape(B, C, H, W)


# --------------------------- pure-JAX reference -------------------------------
def _reference(x, y, scale_w, shift_w, gamma, beta):
    x = x.astype(jnp.float32)
    mean = jnp.mean(x, axis=(0, 2, 3), keepdims=True)
    var = jnp.mean((x - mean) ** 2, axis=(0, 2, 3), keepdims=True)  # biased
    xhat = (x - mean) / jnp.sqrt(var + BN_EPS)
    bn = gamma[None, :, None, None] * xhat + beta[None, :, None, None]
    scale = 1.0 + y @ scale_w
    shift = y @ shift_w
    return scale[:, :, None, None] * bn + shift[:, :, None, None]


# --------------------------------- main ---------------------------------------
if __name__ == "__main__":
    B, CIN, COUT, H, W = 2, 12, 32, 16, 16

    key = jax.random.PRNGKey(0)
    kx, ky, ks, kh, kg, kb = jax.random.split(key, 6)

    x = jax.random.normal(kx, (B, COUT, H, W), dtype=jnp.float32)
    y = jax.random.normal(ky, (B, CIN), dtype=jnp.float32)
    # effective (spectral-normalized) Linear weights, stored as (in, out)
    scale_w = 0.1 * jax.random.normal(ks, (CIN, COUT), dtype=jnp.float32)
    shift_w = 0.1 * jax.random.normal(kh, (CIN, COUT), dtype=jnp.float32)
    # BatchNorm2d affine params
    bn_gamma = 1.0 + 0.05 * jax.random.normal(kg, (COUT,), dtype=jnp.float32)
    bn_beta = 0.05 * jax.random.normal(kb, (COUT,), dtype=jnp.float32)

    fwd = jax.jit(class_conditional_batchnorm2d, static_argnames=("c_tile",))
    # c_tile=8 -> grid=(4,): exercises the channel-tiled / parallel path.
    out = fwd(x, y, scale_w, shift_w, bn_gamma, bn_beta, c_tile=8)
    out = jax.block_until_ready(out)

    ref = _reference(x, y, scale_w, shift_w, bn_gamma, bn_beta)

    assert out.shape == (B, COUT, H, W), out.shape
    assert bool(jnp.all(jnp.isfinite(out)))
    max_err = float(jnp.max(jnp.abs(out - ref)))
    assert max_err < 1e-4, f"mismatch vs reference: {max_err}"
    print("KERNEL_OK")
</pallas_src>

<mosaic_0001>
module attributes {stable_mosaic.version = 11 : i64} {
  func.func @_ccbn_kernel(%arg0: i32, %arg1: memref<2x8x256xf32, #tpu.memory_space<vmem>>, %arg2: memref<2x12xf32, #tpu.memory_space<vmem>>, %arg3: memref<8x12xf32, #tpu.memory_space<vmem>>, %arg4: memref<8x12xf32, #tpu.memory_space<vmem>>, %arg5: memref<8x1xf32, #tpu.memory_space<vmem>>, %arg6: memref<8x1xf32, #tpu.memory_space<vmem>>, %arg7: memref<2x8x256xf32, #tpu.memory_space<vmem>>) attributes {dimension_semantics = [#tpu.dimension_semantics<parallel>], iteration_bounds = array<i64: 4>, scalar_prefetch = 0 : i64, scratch_operands = 0 : i64, tpu.core_type = #tpu.core_type<tc>, window_params = [{transform_indices = @transform_0, window_bounds = array<i64: 2, 8, 256>}, {pipeline_mode = #tpu.pipeline_mode<synchronous>, transform_indices = @transform_1, window_bounds = array<i64: 2, 12>}, {transform_indices = @transform_2, window_bounds = array<i64: 8, 12>}, {transform_indices = @transform_3, window_bounds = array<i64: 8, 12>}, {transform_indices = @transform_4, window_bounds = array<i64: 8, 1>}, {transform_indices = @transform_5, window_bounds = array<i64: 8, 1>}, {transform_indices = @transform_6, window_bounds = array<i64: 2, 8, 256>}]} {
    %c0 = arith.constant 0 : index
    %c0_0 = arith.constant 0 : index
    %c0_1 = arith.constant 0 : index
    %0 = vector.load %arg1[%c0, %c0_0, %c0_1] : memref<2x8x256xf32, #tpu.memory_space<vmem>>, vector<2x8x256xf32>
    %cst = arith.constant dense<0.000000e+00> : vector<8x256xf32>
    %1 = vector.multi_reduction <add>, %0, %cst [0] : vector<2x8x256xf32> to vector<8x256xf32>
    %cst_2 = arith.constant dense<0.000000e+00> : vector<8xf32>
    %2 = vector.multi_reduction <add>, %1, %cst_2 [1] : vector<8x256xf32> to vector<8xf32>
    %3 = vector.shape_cast %2 : vector<8xf32> to vector<8x1xf32>
    %4 = arith.mulf %0, %0 : vector<2x8x256xf32>
    %cst_3 = arith.constant dense<0.000000e+00> : vector<8x256xf32>
    %5 = vector.multi_reduction <add>, %4, %cst_3 [0] : vector<2x8x256xf32> to vector<8x256xf32>
    %cst_4 = arith.constant dense<0.000000e+00> : vector<8xf32>
    %6 = vector.multi_reduction <add>, %5, %cst_4 [1] : vector<8x256xf32> to vector<8xf32>
    %7 = vector.shape_cast %6 : vector<8xf32> to vector<8x1xf32>
    %cst_5 = arith.constant 5.120000e+02 : f32
    %8 = vector.broadcast %cst_5 : f32 to vector<8x1xf32>
    %9 = arith.divf %3, %8 : vector<8x1xf32>
    %cst_6 = arith.constant 5.120000e+02 : f32
    %10 = vector.broadcast %cst_6 : f32 to vector<8x1xf32>
    %11 = arith.divf %7, %10 : vector<8x1xf32>
    %12 = arith.mulf %9, %9 : vector<8x1xf32>
    %13 = arith.subf %11, %12 : vector<8x1xf32>
    %cst_7 = arith.constant 0.000000e+00 : f32
    %14 = vector.broadcast %cst_7 : f32 to vector<8x1xf32>
    %15 = arith.maximumf %13, %14 : vector<8x1xf32>
    %cst_8 = arith.constant 9.99999974E-6 : f32
    %16 = vector.broadcast %cst_8 : f32 to vector<8x1xf32>
    %17 = arith.addf %15, %16 : vector<8x1xf32>
    %18 = math.rsqrt %17 : vector<8x1xf32>
    %c0_9 = arith.constant 0 : index
    %c0_10 = arith.constant 0 : index
    %19 = vector.load %arg2[%c0_9, %c0_10] : memref<2x12xf32, #tpu.memory_space<vmem>>, vector<2x12xf32>
    %c0_11 = arith.constant 0 : index
    %c0_12 = arith.constant 0 : index
    %20 = vector.load %arg3[%c0_11, %c0_12] : memref<8x12xf32, #tpu.memory_space<vmem>>, vector<8x12xf32>
    %cst_13 = arith.constant dense<0.000000e+00> : vector<2x8xf32>
    %21 = tpu.matmul %19, %20, %cst_13 {dimension_numbers = #tpu.dot_dimension_numbers<[1], [1], [0], [0], [0, 0, 1, 0], [], []>} : vector<2x12xf32>, vector<8x12xf32>, vector<2x8xf32> -> vector<2x8xf32>
    %cst_14 = arith.constant 1.000000e+00 : f32
    %22 = vector.broadcast %cst_14 : f32 to vector<2x8xf32>
    %23 = arith.addf %22, %21 : vector<2x8xf32>
    %c0_15 = arith.constant 0 : index
    %c0_16 = arith.constant 0 : index
    %24 = vector.load %arg4[%c0_15, %c0_16] : memref<8x12xf32, #tpu.memory_space<vmem>>, vector<8x12xf32>
    %cst_17 = arith.constant dense<0.000000e+00> : vector<2x8xf32>
    %25 = tpu.matmul %19, %24, %cst_17 {dimension_numbers = #tpu.dot_dimension_numbers<[1], [1], [0], [0], [0, 0, 1, 0], [], []>} : vector<2x12xf32>, vector<8x12xf32>, vector<2x8xf32> -> vector<2x8xf32>
    %c0_18 = arith.constant 0 : index
    %c0_19 = arith.constant 0 : index
    %26 = vector.load %arg5[%c0_18, %c0_19] : memref<8x1xf32, #tpu.memory_space<vmem>>, vector<8x1xf32>
    %27 = arith.mulf %26, %18 : vector<8x1xf32>
    %c0_20 = arith.constant 0 : index
    %c0_21 = arith.constant 0 : index
    %28 = vector.load %arg6[%c0_20, %c0_21] : memref<8x1xf32, #tpu.memory_space<vmem>>, vector<8x1xf32>
    %29 = arith.mulf %9, %27 : vector<8x1xf32>
    %30 = arith.subf %28, %29 : vector<8x1xf32>
    %31 = vector.shape_cast %23 : vector<2x8xf32> to vector<2x8x1xf32>
    %32 = vector.shape_cast %25 : vector<2x8xf32> to vector<2x8x1xf32>
    %33 = vector.shape_cast %27 : vector<8x1xf32> to vector<1x8x1xf32>
    %34 = vector.broadcast %33 : vector<1x8x1xf32> to vector<2x8x1xf32>
    %35 = arith.mulf %31, %34 : vector<2x8x1xf32>
    %36 = vector.shape_cast %30 : vector<8x1xf32> to vector<1x8x1xf32>
    %37 = vector.broadcast %36 : vector<1x8x1xf32> to vector<2x8x1xf32>
    %38 = arith.mulf %31, %37 : vector<2x8x1xf32>
    %39 = arith.addf %38, %32 : vector<2x8x1xf32>
    %40 = vector.broadcast %35 : vector<2x8x1xf32> to vector<2x8x256xf32>
    %41 = arith.mulf %40, %0 : vector<2x8x256xf32>
    %42 = vector.broadcast %39 : vector<2x8x1xf32> to vector<2x8x256xf32>
    %43 = arith.addf %41, %42 : vector<2x8x256xf32>
    %c0_22 = arith.constant 0 : index
    %c0_23 = arith.constant 0 : index
    %c0_24 = arith.constant 0 : index
    %44 = vector.load %arg7[%c0_22, %c0_23, %c0_24] : memref<2x8x256xf32, #tpu.memory_space<vmem>>, vector<2x8x256xf32>
    tpu.vector_store %arg7[%c0_22, %c0_23, %c0_24], %43 {strides = array<i32>} : memref<2x8x256xf32, #tpu.memory_space<vmem>>, vector<2x8x256xf32>,
    return
  }
  func.func @transform_0(%arg0: i32) -> (i32, i32, i32) {
    %c0_i32 = arith.constant 0 : i32
    %c0_i32_0 = arith.constant 0 : i32
    %c0_i32_1 = arith.constant 0 : i32
    return %c0_i32, %arg0, %c0_i32_0 : i32, i32, i32
  }
  func.func @transform_1(%arg0: i32) -> (i32, i32) {
    %c0_i32 = arith.constant 0 : i32
    %c0_i32_0 = arith.constant 0 : i32
    %c0_i32_1 = arith.constant 0 : i32
    return %c0_i32, %c0_i32_0 : i32, i32
  }
  func.func @transform_2(%arg0: i32) -> (i32, i32) {
    %c0_i32 = arith.constant 0 : i32
    %c0_i32_0 = arith.constant 0 : i32
    return %arg0, %c0_i32 : i32, i32
  }
  func.func @transform_3(%arg0: i32) -> (i32, i32) {
    %c0_i32 = arith.constant 0 : i32
    %c0_i32_0 = arith.constant 0 : i32
    return %arg0, %c0_i32 : i32, i32
  }
  func.func @transform_4(%arg0: i32) -> (i32, i32) {
    %c0_i32 = arith.constant 0 : i32
    %c0_i32_0 = arith.constant 0 : i32
    return %arg0, %c0_i32 : i32, i32
  }
  func.func @transform_5(%arg0: i32) -> (i32, i32) {
    %c0_i32 = arith.constant 0 : i32
    %c0_i32_0 = arith.constant 0 : i32
    return %arg0, %c0_i32 : i32, i32
  }
  func.func @transform_6(%arg0: i32) -> (i32, i32, i32) {
    %c0_i32 = arith.constant 0 : i32
    %c0_i32_0 = arith.constant 0 : i32
    %c0_i32_1 = arith.constant 0 : i32
    return %c0_i32, %arg0, %c0_i32_0 : i32, i32, i32
  }
}

</mosaic_0001>

<llo_original>
// kernel: class_conditional_batchnorm2d.1
$region0: #{class_conditional_batchnorm2d.1}
  #allocation0 [shape = 'u32[]', space=smem, size = 0x4, offset = 0x4, fixed_abs, tag = 'smem constant byte address 0x4 - core index']
  #allocation1 [shape = 'u32[144,128]{1,0:T(1,128)}', space=vmem, size = 0x12000, scoped, tag = 'internal scratch']
  %s0 = inlined_call_operand.vmem [shape: f32[2,32,256], index: 0, kind: input, shape index: {}, may-alias: {0,6}]
  %s1 = inlined_call_operand.vmem [shape: f32[2,12], index: 1, kind: input, shape index: {}]
  %s2 = inlined_call_operand.vmem [shape: f32[32,12], index: 2, kind: input, shape index: {}]
  %s3 = inlined_call_operand.vmem [shape: f32[32,12], index: 3, kind: input, shape index: {}]
  %s4 = inlined_call_operand.vmem [shape: f32[32,1], index: 4, kind: input, shape index: {}]
  %s5 = inlined_call_operand.vmem [shape: f32[32,1], index: 5, kind: input, shape index: {}]
  %s6 = inlined_call_operand.vmem [shape: f32[2,32,256], index: 6, kind: output, shape index: {}, may-alias: {0,6}]
  %s7 = sld [smem:[#allocation0]]
  $region99: #{class_conditional_batchnorm2d.1} parent=0
    _
  %s9 = ssub.s32 1, %s7
  %s10 = scalar_select 0, %s9, %s7
  $region1: #{class_conditional_batchnorm2d.1} parent=0
    #allocation2 [shape = 'u8[32768]{0}', space=vmem, size = 0x8000, scoped, tag = 'input window, operand 0']
    #allocation3 [shape = 'u8[32768]{0}', space=vmem, size = 0x8000, scoped, tag = 'output window, operand 0']
    loop: start=0, step=1, limit=6
    $region2: #{class_conditional_batchnorm2d.1} parent=1 // loop_pre_header
      _
    $region3: #{class_conditional_batchnorm2d.1} parent=1 // loop_header
      %s12 = sphi 0, %s16
      %p13 = scmp.ge.s32.totalorder %s12, 6
      %s22 = sphi 0, %s24
      %s25 = sphi 0, %s22
      %s26 = sphi 0, %s25
      %s42 = sphi 0, %s26
      %s46 = sphi 0, %s46
      %s48 = sphi 0, %s46
      %s49 = sphi 0, %s48
      %s63 = sphi 0, %s49
      %s69 = sphi 0, %s71
      %s72 = sphi 0, %s69
      %s73 = sphi 0, %s72
      %s89 = sphi 0, %s73
      %s95 = sphi 0, %s97
      %s98 = sphi 0, %s95
      %s99 = sphi 0, %s98
      %s115 = sphi 0, %s99
      %s121 = sphi 0, %s123
      %s124 = sphi 0, %s121
      %s125 = sphi 0, %s124
      %s141 = sphi 0, %s125
      %s147 = sphi 0, %s149
      %s150 = sphi 0, %s147
      %s151 = sphi 0, %s150
      %s167 = sphi 0, %s151
      %s173 = sphi 0, %s175
      %s176 = sphi 0, %s173
      %s177 = sphi 0, %s176
      %s193 = sphi 0, %s177
    $region4: #{class_conditional_batchnorm2d.1} parent=1 // loop_header_branch
      %15 = sbr.rel (%p13) target = $region8
    $region5: #{class_conditional_batchnorm2d.1} parent=1 // loop_body
      %s17 = ssub.s32 %s12, 1
      %s18 = ssub.s32 %s12, 2
      %s19 = sadd.s32 %s12, 1
      %s20 = ssub.s32 %s12, %s19
      %p21 = scmp.eq.s32.totalorder %s20, 0
      %s23 = sadd.s32 %s22, 1
      %s24 = scalar_select %p21, %s22, %s23
      %p27 = pneg %p21
      %p28 = scmp.eq.s32.totalorder %s12, 3
      %p29 = por %p27, %p28
      %p30 = scmp.ne.s32.totalorder %s22, %s25
      %p31 = scmp.eq.s32.totalorder %s12, 0
      %p32 = por %p30, %p31
      %p33 = scmp.ne.s32.totalorder %s22, %s25
      %p34 = scmp.eq.s32.totalorder %s17, 3
      %p35 = por %p33, %p34
      %p36 = scmp.ne.s32.totalorder %s25, %s26
      %p37 = scmp.eq.s32.totalorder %s17, 0
      %p38 = por %p36, %p37
      %p39 = scmp.ne.s32.totalorder %s25, %s26
      %p40 = scmp.eq.s32.totalorder %s18, 3
      %p41 = por %p39, %p40
      %p43 = scmp.ne.s32.totalorder %s26, %s42
      %p44 = scmp.eq.s32.totalorder %s18, 0
      %p45 = por %p43, %p44
      %s47 = sadd.s32 %s46, 1
      %p50 = scmp.eq.s32.totalorder %s12, 3
      %p51 = scmp.ne.s32.totalorder %s46, %s48
      %p52 = scmp.eq.s32.totalorder %s12, 0
      %p53 = por %p51, %p52
      %p54 = scmp.ne.s32.totalorder %s46, %s48
      %p55 = scmp.eq.s32.totalorder %s17, 3
      %p56 = por %p54, %p55
      %p57 = scmp.ne.s32.totalorder %s48, %s49
      %p58 = scmp.eq.s32.totalorder %s17, 0
      %p59 = por %p57, %p58
      %p60 = scmp.ne.s32.totalorder %s48, %s49
      %p61 = scmp.eq.s32.totalorder %s18, 3
      %p62 = por %p60, %p61
      %p64 = scmp.ne.s32.totalorder %s49, %s63
      %p65 = scmp.eq.s32.totalorder %s18, 0
      %p66 = por %p64, %p65
      %s67 = ssub.s32 %s12, %s19
      %p68 = scmp.eq.s32.totalorder %s67, 0
      %s70 = sadd.s32 %s69, 1
      %s71 = scalar_select %p68, %s69, %s70
      %p74 = pneg %p68
      %p75 = scmp.eq.s32.totalorder %s12, 3
      %p76 = por %p74, %p75
      %p77 = scmp.ne.s32.totalorder %s69, %s72
      %p78 = scmp.eq.s32.totalorder %s12, 0
      %p79 = por %p77, %p78
      %p80 = scmp.ne.s32.totalorder %s69, %s72
      %p81 = scmp.eq.s32.totalorder %s17, 3
      %p82 = por %p80, %p81
      %p83 = scmp.ne.s32.totalorder %s72, %s73
      %p84 = scmp.eq.s32.totalorder %s17, 0
      %p85 = por %p83, %p84
      %p86 = scmp.ne.s32.totalorder %s72, %s73
      %p87 = scmp.eq.s32.totalorder %s18, 3
      %p88 = por %p86, %p87
      %p90 = scmp.ne.s32.totalorder %s73, %s89
      %p91 = scmp.eq.s32.totalorder %s18, 0
      %p92 = por %p90, %p91
      %s93 = ssub.s32 %s12, %s19
      %p94 = scmp.eq.s32.totalorder %s93, 0
      %s96 = sadd.s32 %s95, 1
      %s97 = scalar_select %p94, %s95, %s96
      %p100 = pneg %p94
      %p101 = scmp.eq.s32.totalorder %s12, 3
      %p102 = por %p100, %p101
      %p103 = scmp.ne.s32.totalorder %s95, %s98
      %p104 = scmp.eq.s32.totalorder %s12, 0
      %p105 = por %p103, %p104
      %p106 = scmp.ne.s32.totalorder %s95, %s98
      %p107 = scmp.eq.s32.totalorder %s17, 3
      %p108 = por %p106, %p107
      %p109 = scmp.ne.s32.totalorder %s98, %s99
      %p110 = scmp.eq.s32.totalorder %s17, 0
      %p111 = por %p109, %p110
      %p112 = scmp.ne.s32.totalorder %s98, %s99
      %p113 = scmp.eq.s32.totalorder %s18, 3
      %p114 = por %p112, %p113
      %p116 = scmp.ne.s32.totalorder %s99, %s115
      %p117 = scmp.eq.s32.totalorder %s18, 0
      %p118 = por %p116, %p117
      %s119 = ssub.s32 %s12, %s19
      %p120 = scmp.eq.s32.totalorder %s119, 0
      %s122 = sadd.s32 %s121, 1
      %s123 = scalar_select %p120, %s121, %s122
      %p126 = pneg %p120
      %p127 = scmp.eq.s32.totalorder %s12, 3
      %p128 = por %p126, %p127
      %p129 = scmp.ne.s32.totalorder %s121, %s124
      %p130 = scmp.eq.s32.totalorder %s12, 0
      %p131 = por %p129, %p130
      %p132 = scmp.ne.s32.totalorder %s121, %s124
      %p133 = scmp.eq.s32.totalorder %s17, 3
      %p134 = por %p132, %p133
      %p135 = scmp.ne.s32.totalorder %s124, %s125
      %p136 = scmp.eq.s32.totalorder %s17, 0
      %p137 = por %p135, %p136
      %p138 = scmp.ne.s32.totalorder %s124, %s125
      %p139 = scmp.eq.s32.totalorder %s18, 3
      %p140 = por %p138, %p139
      %p142 = scmp.ne.s32.totalorder %s125, %s141
      %p143 = scmp.eq.s32.totalorder %s18, 0
      %p144 = por %p142, %p143
      %s145 = ssub.s32 %s12, %s19
      %p146 = scmp.eq.s32.totalorder %s145, 0
      %s148 = sadd.s32 %s147, 1
      %s149 = scalar_select %p146, %s147, %s148
      %p152 = pneg %p146
      %p153 = scmp.eq.s32.totalorder %s12, 3
      %p154 = por %p152, %p153
      %p155 = scmp.ne.s32.totalorder %s147, %s150
      %p156 = scmp.eq.s32.totalorder %s12, 0
      %p157 = por %p155, %p156
      %p158 = scmp.ne.s32.totalorder %s147, %s150
      %p159 = scmp.eq.s32.totalorder %s17, 3
      %p160 = por %p158, %p159
      %p161 = scmp.ne.s32.totalorder %s150, %s151
      %p162 = scmp.eq.s32.totalorder %s17, 0
      %p163 = por %p161, %p162
      %p164 = scmp.ne.s32.totalorder %s150, %s151
      %p165 = scmp.eq.s32.totalorder %s18, 3
      %p166 = por %p164, %p165
      %p168 = scmp.ne.s32.totalorder %s151, %s167
      %p169 = scmp.eq.s32.totalorder %s18, 0
      %p170 = por %p168, %p169
      %s171 = ssub.s32 %s12, %s19
      %p172 = scmp.eq.s32.totalorder %s171, 0
      %s174 = sadd.s32 %s173, 1
      %s175 = scalar_select %p172, %s173, %s174
      %p178 = pneg %p172
      %p179 = scmp.eq.s32.totalorder %s12, 3
      %p180 = por %p178, %p179
      %p181 = scmp.ne.s32.totalorder %s173, %s176
      %p182 = scmp.eq.s32.totalorder %s12, 0
      %p183 = por %p181, %p182
      %p184 = scmp.ne.s32.totalorder %s173, %s176
      %p185 = scmp.eq.s32.totalorder %s17, 3
      %p186 = por %p184, %p185
      %p187 = scmp.ne.s32.totalorder %s176, %s177
      %p188 = scmp.eq.s32.totalorder %s17, 0
      %p189 = por %p187, %p188
      %p190 = scmp.ne.s32.totalorder %s176, %s177
      %p191 = scmp.eq.s32.totalorder %s18, 3
      %p192 = por %p190, %p191
      %p194 = scmp.ne.s32.totalorder %s177, %s193
      %p195 = scmp.eq.s32.totalorder %s18, 0
      %p196 = por %p194, %p195
      %p197 = scmp.le.s32.totalorder 1, %s12
      %p198 = scmp.lt.s32.totalorder %s12, 5
      %p199 = pnand %p197, %p198
      %p200 = pneg %p199
      // Predicated region
      $region9: #{class_conditional_batchnorm2d.1} parent=5 // pred_check
        _
      $region10: #{class_conditional_batchnorm2d.1} parent=5 // pred_check_branch
        %202 = sbr.rel (%p199) target = $region12
      $region11: #{class_conditional_batchnorm2d.1} parent=5 // pred_region
        %s203 = ssub.s32 %s12, 1
        // Predicated region
        $region13: #{class_conditional_batchnorm2d.1} parent=11 // pred_check
          %p204 = pneg %p59
        $region14: #{class_conditional_batchnorm2d.1} parent=11 // pred_check_branch
          %206 = sbr.rel (%p204) target = $region16
        $region15: #{class_conditional_batchnorm2d.1} parent=11 // pred_region
          _
        $region16: #{class_conditional_batchnorm2d.1} parent=11 // pred_fallthru
          _
      $region12: #{class_conditional_batchnorm2d.1} parent=5 // pred_fallthru
        _
      %p207 = scmp.lt.s32.totalorder %s12, 4
      // Predicated region
      $region17: #{class_conditional_batchnorm2d.1} parent=5 // pred_check
        %p208 = pneg %p207
      $region18: #{class_conditional_batchnorm2d.1} parent=5 // pred_check_branch
        %210 = sbr.rel (%p208) target = $region20
      $region19: #{class_conditional_batchnorm2d.1} parent=5 // pred_region
        // Predicated region
        $region21: #{class_conditional_batchnorm2d.1} parent=19 // pred_check
          %p211 = pneg %p32
        $region22: #{class_conditional_batchnorm2d.1} parent=19 // pred_check_branch
          %213 = sbr.rel (%p211) target = $region24
        $region23: #{class_conditional_batchnorm2d.1} parent=19 // pred_region
          %s214 = sand.u32 %s22, 1
          %s215 = sand.u32 %s22, 1
          %s216 = smul.addr %s215, 32
          %s217 = scalar_lea.vmem [#allocation2], %s216
          %s218 = smul.addr %s12, 2
          %s219 = smul.addr %s218, 8
          %s220 = scalar_lea.vmem %s0, %s219
          // Predicated region
          $region25: #{class_conditional_batchnorm2d.1} parent=23 // pred_check
            _
          $region26: #{class_conditional_batchnorm2d.1} parent=23 // pred_check_branch
            %222 = sbr.rel (0) target = $region28
          $region27: #{class_conditional_batchnorm2d.1} parent=23 // pred_region
            // Predicated region
            $region29: #{class_conditional_batchnorm2d.1} parent=27 // pred_check
              _
            $region30: #{class_conditional_batchnorm2d.1} parent=27 // pred_check_branch
              %224 = sbr.rel (0) target = $region32
            $region31: #{class_conditional_batchnorm2d.1} parent=27 // pred_region
              loop: start=0, step=1, limit=1
              $region33: #{class_conditional_batchnorm2d.1} parent=31 // loop_pre_header
                _
              $region34: #{class_conditional_batchnorm2d.1} parent=31 // loop_header
                %s226 = sphi 0, %s230
                %p227 = scmp.ge.s32.totalorder %s226, 1
                %s231 = sphi %s220, %s220
                %s232 = sphi %s217, %s217
              $region35: #{class_conditional_batchnorm2d.1} parent=31 // loop_header_branch
                %229 = sbr.rel (%p227) target = $region39
              $region36: #{class_conditional_batchnorm2d.1} parent=31 // loop_body
                %v233 = vld [vmem:[%s231] sm:$0xff]
                %234 = vst [vmem:[%s232] sm:$0xff] %v233
                %v235 = vld [vmem:[%s231 + $0x8] sm:$0xff]
                %236 = vst [vmem:[%s232 + $0x8] sm:$0xff] %v235
                %v237 = vld [vmem:[%s231 + $0x40] sm:$0xff]
                %238 = vst [vmem:[%s232 + $0x10] sm:$0xff] %v237
                %v239 = vld [vmem:[%s231 + $0x48] sm:$0xff]
                %240 = vst [vmem:[%s232 + $0x18] sm:$0xff] %v239
              $region37: #{class_conditional_batchnorm2d.1} parent=31 // loop_footer
                %s230 = sadd.s32 1, %s226
              $region38: #{class_conditional_batchnorm2d.1} parent=31 // loop_footer_branch
                %225 = sbr.rel target = $region34
              $region39: #{class_conditional_batchnorm2d.1} parent=31 // loop_exit
                _
            $region32: #{class_conditional_batchnorm2d.1} parent=27 // pred_fallthru
              _
            // Predicated region
            $region40: #{class_conditional_batchnorm2d.1} parent=27 // pred_check
              _
            $region41: #{class_conditional_batchnorm2d.1} parent=27 // pred_check_branch
              %242 = sbr.rel target = $region43
            $region42: #{class_conditional_batchnorm2d.1} parent=27 // pred_region
              _
            $region43: #{class_conditional_batchnorm2d.1} parent=27 // pred_fallthru
              _
          $region28: #{class_conditional_batchnorm2d.1} parent=23 // pred_fallthru
            _
          %243 = vnop
        $region24: #{class_conditional_batchnorm2d.1} parent=19 // pred_fallthru
          _
        // Predicated region
        $region44: #{class_conditional_batchnorm2d.1} parent=19 // pred_check
          %p244 = pneg %p79
        $region45: #{class_conditional_batchnorm2d.1} parent=19 // pred_check_branch
          %246 = sbr.rel (%p244) target = $region47
        $region46: #{class_conditional_batchnorm2d.1} parent=19 // pred_region
          %p247 = scmp.lt.s32.totalorder %s12, 3
          %s248 = scalar_select %p247, %s12, 3
          %s249 = smul.addr %s248, 8
          %s250 = scalar_lea.vmem %s2, %s249
        $region47: #{class_conditional_batchnorm2d.1} parent=19 // pred_fallthru
          _
        // Predicated region
        $region48: #{class_conditional_batchnorm2d.1} parent=19 // pred_check
          %p251 = pneg %p105
        $region49: #{class_conditional_batchnorm2d.1} parent=19 // pred_check_branch
          %253 = sbr.rel (%p251) target = $region51
        $region50: #{class_conditional_batchnorm2d.1} parent=19 // pred_region
          %p254 = scmp.lt.s32.totalorder %s12, 3
          %s255 = scalar_select %p254, %s12, 3
          %s256 = smul.addr %s255, 8
          %s257 = scalar_lea.vmem %s3, %s256
        $region51: #{class_conditional_batchnorm2d.1} parent=19 // pred_fallthru
          _
        // Predicated region
        $region52: #{class_conditional_batchnorm2d.1} parent=19 // pred_check
          %p258 = pneg %p131
        $region53: #{class_conditional_batchnorm2d.1} parent=19 // pred_check_branch
          %260 = sbr.rel (%p258) target = $region55
        $region54: #{class_conditional_batchnorm2d.1} parent=19 // pred_region
          %p261 = scmp.lt.s32.totalorder %s12, 3
          %s262 = scalar_select %p261, %s12, 3
          %s263 = smul.addr %s262, 8
          %s264 = scalar_lea.vmem %s4, %s263
        $region55: #{class_conditional_batchnorm2d.1} parent=19 // pred_fallthru
          _
        // Predicated region
        $region56: #{class_conditional_batchnorm2d.1} parent=19 // pred_check
          %p265 = pneg %p157
        $region57: #{class_conditional_batchnorm2d.1} parent=19 // pred_check_branch
          %267 = sbr.rel (%p265) target = $region59
        $region58: #{class_conditional_batchnorm2d.1} parent=19 // pred_region
          %p268 = scmp.lt.s32.totalorder %s12, 3
          %s269 = scalar_select %p268, %s12, 3
          %s270 = smul.addr %s269, 8
          %s271 = scalar_lea.vmem %s5, %s270
        $region59: #{class_conditional_batchnorm2d.1} parent=19 // pred_fallthru
          _
      $region20: #{class_conditional_batchnorm2d.1} parent=5 // pred_fallthru
        _
      %p272 = scmp.le.s32.totalorder 1, %s12
      %p273 = scmp.lt.s32.totalorder %s12, 5
      %p274 = pnand %p272, %p273
      %p275 = pneg %p274
      // Predicated region
      $region60: #{class_conditional_batchnorm2d.1} parent=5 // pred_check
        _
      $region61: #{class_conditional_batchnorm2d.1} parent=5 // pred_check_branch
        %277 = sbr.rel (%p274) target = $region63
      $region62: #{class_conditional_batchnorm2d.1} parent=5 // pred_region
        %s278 = ssub.s32 %s12, 1
        %s279 = sand.u32 %s25, 1
        %s280 = sand.u32 %s25, 1
        %s281 = smul.addr %s280, 32
        %s282 = scalar_lea.vmem [#allocation2], %s281
        // Predicated region
        $region64: #{class_conditional_batchnorm2d.1} parent=62 // pred_check
          %p283 = pneg %p38
        $region65: #{class_conditional_batchnorm2d.1} parent=62 // pred_check_branch
          %285 = sbr.rel (%p283) target = $region67
        $region66: #{class_conditional_batchnorm2d.1} parent=62 // pred_region
          _
        $region67: #{class_conditional_batchnorm2d.1} parent=62 // pred_fallthru
          _
        %s286 = sand.u32 %s25, 1
        %s287 = sand.u32 %s25, 1
        %s288 = smul.addr %s287, 32
        %s289 = scalar_lea.vmem [#allocation2], %s288
        %p290 = pneg %p38
        %p291 = pneg %p35
        %p292 = pneg %p59
        %p293 = pneg %p56
        %p294 = scmp.lt.s32.totalorder %s17, 3
        %s295 = scalar_select %p294, %s17, 3
        %s296 = smul.addr %s295, 8
        %s297 = scalar_lea.vmem %s2, %s296
        %p298 = pneg %p85
        %p299 = pneg %p82
        %p300 = scmp.lt.s32.totalorder %s17, 3
        %s301 = scalar_select %p300, %s17, 3
        %s302 = smul.addr %s301, 8
        %s303 = scalar_lea.vmem %s3, %s302
        %p304 = pneg %p111
        %p305 = pneg %p108
        %p306 = scmp.lt.s32.totalorder %s17, 3
        %s307 = scalar_select %p306, %s17, 3
        %s308 = smul.addr %s307, 8
        %s309 = scalar_lea.vmem %s4, %s308
        %p310 = pneg %p137
        %p311 = pneg %p134
        %p312 = scmp.lt.s32.totalorder %s17, 3
        %s313 = scalar_select %p312, %s17, 3
        %s314 = smul.addr %s313, 8
        %s315 = scalar_lea.vmem %s5, %s314
        %p316 = pneg %p163
        %p317 = pneg %p160
        %p318 = pneg %p189
        %p319 = pneg %p186
        %s320 = sand.u32 %s176, 1
        %s321 = sand.u32 %s176, 1
        %s322 = smul.addr %s321, 32
        %s323 = scalar_lea.vmem [#allocation3], %s322
        %p324 = scmp.lt.s32.totalorder %s17, 3
        %s325 = scalar_select %p324, %s17, 3
        %s326 = smul.addr %s325, 8
        %s327 = scalar_lea.vmem %s2, %s326
        %p328 = scmp.lt.s32.totalorder %s17, 3
        %s329 = scalar_select %p328, %s17, 3
        %s330 = smul.addr %s329, 8
        %s331 = scalar_lea.vmem %s3, %s330
        %p332 = scmp.lt.s32.totalorder %s17, 3
        %s333 = scalar_select %p332, %s17, 3
        %s334 = smul.addr %s333, 8
        %s335 = scalar_lea.vmem %s4, %s334
        %p336 = scmp.lt.s32.totalorder %s17, 3
        %s337 = scalar_select %p336, %s17, 3
        %s338 = smul.addr %s337, 8
        %s339 = scalar_lea.vmem %s5, %s338
        %v340 = vld [vmem:[%s282] sm:$0xff]
        %v341 = vld [vmem:[%s282 + $0x8] sm:$0xff]
        %v342 = vld [vmem:[%s282 + $0x10] sm:$0xff]
        %v343 = vld [vmem:[%s282 + $0x18] sm:$0xff]
        %v344 = vadd.f32 %v340, %v342
        %v345 = vadd.f32 %v341, %v343
        %v346 = vadd.f32 %v344, %v345
        %347 = vadd.xlane.f32.xlu0 %v346
        %v348 = vpop.xlane.xlu0 %347
        %v349 = vmul.f32 %v340, %v340
        %v350 = vmul.f32 %v341, %v341
        %v351 = vmul.f32 %v342, %v342
        %v352 = vmul.f32 %v343, %v343
        %v353 = vadd.f32 %v349, %v351
        %v354 = vadd.f32 %v350, %v352
        %v355 = vadd.f32 %v353, %v354
        %356 = vadd.xlane.f32.xlu0 %v355
        %v357 = vpop.xlane.xlu0 %356
        %v358 = vrcp.pop 512.0
        %v359 = vmul.f32 %v348, %v358
        %v360 = vmul.f32 %v357, %v358
        %v361 = vmul.f32 %v359, %v359
        %v362 = vsub.f32 %v360, %v361
        %v363 = vmax.f32 %v362, 0.0
        %v364 = vadd.f32 %v363, 1e-05
        %v365 = vrsqrt.pop %v364
        %v366 = vld [vmem:[%s1] sm:$0x3]
        %v367 = vld [vmem:[%s327] sm:$0xff]
        %vm368 = vcmask 97280
        %v370 = vsel %vm368, %v366, 0
        %v373 = vsel %vm368, %v367, 0
        %375 = vmatprep.subr.mxu0 0.0
        %376 = vmatpush1.xpose.msra.mxu0 0.0
        %377 = vmatprep.subr.mxu0 0.0
        %378 = vmatpush1.xpose.msra.mxu0 0.0
        %379 = vmatprep.subr.mxu0 0.0
        %380 = vmatpush1.xpose.msra.mxu0 0.0
        %381 = vmatprep.subr.mxu0 0.0
        %382 = vmatpush1.xpose.msra.mxu0 0.0
        %383 = vmatprep.subr.mxu0 0.0
        %384 = vmatpush1.xpose.msra.mxu0 0.0
        %385 = vmatprep.subr.mxu0 0.0
        %386 = vmatpush1.xpose.msra.mxu0 0.0
        %387 = vmatprep.subr.mxu0 0.0
        %388 = vmatpush1.xpose.msra.mxu0 0.0
        %389 = vmatprep.subr.mxu0 0.0
        %390 = vmatpush1.xpose.msra.mxu0 0.0
        %391 = vmatprep.subr.mxu0 0.0
        %392 = vmatpush1.xpose.msra.mxu0 0.0
        %393 = vmatprep.subr.mxu0 0.0
        %394 = vmatpush1.xpose.msra.mxu0 0.0
        %395 = vmatprep.subr.mxu0 0.0
        %396 = vmatpush1.xpose.msra.mxu0 0.0
        %397 = vmatprep.subr.mxu0 0.0
        %398 = vmatpush1.xpose.msra.mxu0 0.0
        %399 = vmatprep.subr.mxu0 0.0
        %400 = vmatpush1.xpose.msra.mxu0 0.0
        %401 = vmatprep.subr.mxu0 0.0
        %402 = vmatpush1.xpose.msra.mxu0 0.0
        %403 = vmatprep.subr.mxu0 0.0
        %404 = vmatpush1.xpose.msra.mxu0 0.0
        %405 = vmatprep.subr.mxu0 0.0
        %406 = vmatpush1.xpose.msra.mxu0 %v373
        %407 = vmatprep.subr.mxu0 0.0
        %408 = vmatpush2.xpose.msra.mxu0 0.0
        %409 = vmatprep.subr.mxu0 0.0
        %410 = vmatpush2.xpose.msra.mxu0 0.0
        %411 = vmatprep.subr.mxu0 0.0
        %412 = vmatpush2.xpose.msra.mxu0 0.0
        %413 = vmatprep.subr.mxu0 0.0
        %414 = vmatpush2.xpose.msra.mxu0 0.0
        %415 = vmatprep.subr.mxu0 0.0
        %416 = vmatpush2.xpose.msra.mxu0 0.0
        %417 = vmatprep.subr.mxu0 0.0
        %418 = vmatpush2.xpose.msra.mxu0 0.0
        %419 = vmatprep.subr.mxu0 0.0
        %420 = vmatpush2.xpose.msra.mxu0 0.0
        %421 = vmatprep.subr.mxu0 0.0
        %422 = vmatpush2.xpose.msra.mxu0 0.0
        %423 = vmatprep.subr.mxu0 0.0
        %424 = vmatpush2.xpose.msra.mxu0 0.0
        %425 = vmatprep.subr.mxu0 0.0
        %426 = vmatpush2.xpose.msra.mxu0 0.0
        %427 = vmatprep.subr.mxu0 0.0
        %428 = vmatpush2.xpose.msra.mxu0 0.0
        %429 = vmatprep.subr.mxu0 0.0
        %430 = vmatpush2.xpose.msra.mxu0 0.0
        %431 = vmatprep.subr.mxu0 0.0
        %432 = vmatpush2.xpose.msra.mxu0 0.0
        %433 = vmatprep.subr.mxu0 0.0
        %434 = vmatpush2.xpose.msra.mxu0 0.0
        %435 = vmatprep.subr.mxu0 0.0
        %436 = vmatpush2.xpose.msra.mxu0 0.0
        %437 = vmatprep.subr.mxu0 0.0
        %438 = vmatpush2.xpose.msra.mxu0 0.0
        %439 = vmatprep.mubr.f32.mxu0 0.0
        %440 = vmatmul.mubr.f32.gmra.mxu0 %v370
        %v441 = vpop.f32.mrf.mxu0
        %v442 = vadd.f32 1.0, %v441
        %v443 = vpop.f32.mrf.mxu0
        %444 = vdwg.mxu0
        %v445 = vld [vmem:[%s331] sm:$0xff]
        %v447 = vsel %vm368, %v445, 0
        %449 = vmatprep.subr.mxu0 0.0
        %450 = vmatpush1.xpose.msra.mxu0 0.0
        %451 = vmatprep.subr.mxu0 0.0
        %452 = vmatpush1.xpose.msra.mxu0 0.0
        %453 = vmatprep.subr.mxu0 0.0
        %454 = vmatpush1.xpose.msra.mxu0 0.0
        %455 = vmatprep.subr.mxu0 0.0
        %456 = vmatpush1.xpose.msra.mxu0 0.0
        %457 = vmatprep.subr.mxu0 0.0
        %458 = vmatpush1.xpose.msra.mxu0 0.0
        %459 = vmatprep.subr.mxu0 0.0
        %460 = vmatpush1.xpose.msra.mxu0 0.0
        %461 = vmatprep.subr.mxu0 0.0
        %462 = vmatpush1.xpose.msra.mxu0 0.0
        %463 = vmatprep.subr.mxu0 0.0
        %464 = vmatpush1.xpose.msra.mxu0 0.0
        %465 = vmatprep.subr.mxu0 0.0
        %466 = vmatpush1.xpose.msra.mxu0 0.0
        %467 = vmatprep.subr.mxu0 0.0
        %468 = vmatpush1.xpose.msra.mxu0 0.0
        %469 = vmatprep.subr.mxu0 0.0
        %470 = vmatpush1.xpose.msra.mxu0 0.0
        %471 = vmatprep.subr.mxu0 0.0
        %472 = vmatpush1.xpose.msra.mxu0 0.0
        %473 = vmatprep.subr.mxu0 0.0
        %474 = vmatpush1.xpose.msra.mxu0 0.0
        %475 = vmatprep.subr.mxu0 0.0
        %476 = vmatpush1.xpose.msra.mxu0 0.0
        %477 = vmatprep.subr.mxu0 0.0
        %478 = vmatpush1.xpose.msra.mxu0 0.0
        %479 = vmatprep.subr.mxu0 0.0
        %480 = vmatpush1.xpose.msra.mxu0 %v447
        %481 = vmatprep.subr.mxu0 0.0
        %482 = vmatpush2.xpose.msra.mxu0 0.0
        %483 = vmatprep.subr.mxu0 0.0
        %484 = vmatpush2.xpose.msra.mxu0 0.0
        %485 = vmatprep.subr.mxu0 0.0
        %486 = vmatpush2.xpose.msra.mxu0 0.0
        %487 = vmatprep.subr.mxu0 0.0
        %488 = vmatpush2.xpose.msra.mxu0 0.0
        %489 = vmatprep.subr.mxu0 0.0
        %490 = vmatpush2.xpose.msra.mxu0 0.0
        %491 = vmatprep.subr.mxu0 0.0
        %492 = vmatpush2.xpose.msra.mxu0 0.0
        %493 = vmatprep.subr.mxu0 0.0
        %494 = vmatpush2.xpose.msra.mxu0 0.0
        %495 = vmatprep.subr.mxu0 0.0
        %496 = vmatpush2.xpose.msra.mxu0 0.0
        %497 = vmatprep.subr.mxu0 0.0
        %498 = vmatpush2.xpose.msra.mxu0 0.0
        %499 = vmatprep.subr.mxu0 0.0
        %500 = vmatpush2.xpose.msra.mxu0 0.0
        %501 = vmatprep.subr.mxu0 0.0
        %502 = vmatpush2.xpose.msra.mxu0 0.0
        %503 = vmatprep.subr.mxu0 0.0
        %504 = vmatpush2.xpose.msra.mxu0 0.0
        %505 = vmatprep.subr.mxu0 0.0
        %506 = vmatpush2.xpose.msra.mxu0 0.0
        %507 = vmatprep.subr.mxu0 0.0
        %508 = vmatpush2.xpose.msra.mxu0 0.0
        %509 = vmatprep.subr.mxu0 0.0
        %510 = vmatpush2.xpose.msra.mxu0 0.0
        %511 = vmatprep.subr.mxu0 0.0
        %512 = vmatpush2.xpose.msra.mxu0 0.0
        %513 = vmatprep.mubr.f32.mxu0 0.0
        %514 = vmatmul.mubr.f32.gmra.mxu0 %v370
        %v515 = vpop.f32.mrf.mxu0
        %v516 = vadd.f32 0.0, %v515
        %v517 = vpop.f32.mrf.mxu0
        %518 = vdwg.mxu0
        %v519 = vld [vmem:[%s335] sm:$0xff]
        %v520 = vmul.f32 %v519, %v365
        %v521 = vld [vmem:[%s339] sm:$0xff]
        %v522 = vmul.f32 %v359, %v520
        %v523 = vsub.f32 %v521, %v522
        %v524 = vlaneseq
        %v525 = vshrl.u32 %v524, 7
        %v526 = vsub.s32 0, %v525
        %v527 = vrot.slane %v442, %v526
        %529 = vbcast.lane.b32.xlu0 %v527, 256
        %v530 = vpop.permute.xlu0 %529
        %v531 = vlaneseq
        %v532 = vshrl.u32 %v531, 7
        %v533 = vsub.s32 1, %v532
        %v534 = vrot.slane %v442, %v533
        %536 = vbcast.lane.b32.xlu0 %v534, 256
        %v537 = vpop.permute.xlu0 %536
        %v538 = vlaneseq
        %v539 = vshrl.u32 %v538, 7
        %v540 = vsub.s32 0, %v539
        %v541 = vrot.slane %v516, %v540
        %543 = vbcast.lane.b32.xlu0 %v541, 256
        %v544 = vpop.permute.xlu0 %543
        %v545 = vlaneseq
        %v546 = vshrl.u32 %v545, 7
        %v547 = vsub.s32 1, %v546
        %v548 = vrot.slane %v516, %v547
        %550 = vbcast.lane.b32.xlu0 %v548, 256
        %v551 = vpop.permute.xlu0 %550
        %v552 = vmul.f32 %v530, %v520
        %v553 = vmul.f32 %v537, %v520
        %v554 = vmul.f32 %v530, %v523
        %v555 = vmul.f32 %v537, %v523
        %v556 = vadd.f32 %v554, %v544
        %v557 = vadd.f32 %v555, %v551
        %559 = vset.pattern.permute.xlu0 0
        %560 = vperm.xlu0 %559, %v552
        %v561 = vpop.permute.xlu0 %560
        %564 = vset.pattern.permute.xlu0 0
        %565 = vperm.xlu0 %564, %v553
        %v566 = vpop.permute.xlu0 %565
        %v568 = vmul.f32 %v561, %v340
        %v569 = vmul.f32 %v561, %v341
        %v570 = vmul.f32 %v566, %v342
        %v571 = vmul.f32 %v566, %v343
        %573 = vset.pattern.permute.xlu0 0
        %574 = vperm.xlu0 %573, %v556
        %v575 = vpop.permute.xlu0 %574
        %578 = vset.pattern.permute.xlu0 0
        %579 = vperm.xlu0 %578, %v557
        %v580 = vpop.permute.xlu0 %579
        %v582 = vadd.f32 %v568, %v575
        %v583 = vadd.f32 %v569, %v575
        %v584 = vadd.f32 %v570, %v580
        %v585 = vadd.f32 %v571, %v580
        %586 = vst [vmem:[%s323] sm:$0xff] %v582
        %587 = vst [vmem:[%s323 + $0x8] sm:$0xff] %v583
        %588 = vst [vmem:[%s323 + $0x10] sm:$0xff] %v584
        %589 = vst [vmem:[%s323 + $0x18] sm:$0xff] %v585
        %s590 = sand.u32 %s176, 1
        %s591 = sand.u32 %s176, 1
        %s592 = smul.addr %s591, 32
        %s593 = scalar_lea.vmem [#allocation3], %s592
        // Predicated region
        $region68: #{class_conditional_batchnorm2d.1} parent=62 // pred_check
          %p594 = pneg %p186
        $region69: #{class_conditional_batchnorm2d.1} parent=62 // pred_check_branch
          %596 = sbr.rel (%p594) target = $region71
        $region70: #{class_conditional_batchnorm2d.1} parent=62 // pred_region
          %s597 = smul.addr %s17, 2
          %s598 = smul.addr %s597, 8
          %s599 = scalar_lea.vmem %s6, %s598
          // Predicated region
          $region72: #{class_conditional_batchnorm2d.1} parent=70 // pred_check
            _
          $region73: #{class_conditional_batchnorm2d.1} parent=70 // pred_check_branch
            %601 = sbr.rel (0) target = $region75
          $region74: #{class_conditional_batchnorm2d.1} parent=70 // pred_region
            // Predicated region
            $region76: #{class_conditional_batchnorm2d.1} parent=74 // pred_check
              _
            $region77: #{class_conditional_batchnorm2d.1} parent=74 // pred_check_branch
              %603 = sbr.rel (0) target = $region79
            $region78: #{class_conditional_batchnorm2d.1} parent=74 // pred_region
              loop: start=0, step=1, limit=1
              $region80: #{class_conditional_batchnorm2d.1} parent=78 // loop_pre_header
                _
              $region81: #{class_conditional_batchnorm2d.1} parent=78 // loop_header
                %s605 = sphi 0, %s609
                %p606 = scmp.ge.s32.totalorder %s605, 1
                %s610 = sphi %s593, %s593
                %s611 = sphi %s599, %s599
              $region82: #{class_conditional_batchnorm2d.1} parent=78 // loop_header_branch
                %608 = sbr.rel (%p606) target = $region86
              $region83: #{class_conditional_batchnorm2d.1} parent=78 // loop_body
                %v612 = vld [vmem:[%s610] sm:$0xff]
                %613 = vst [vmem:[%s611] sm:$0xff] %v612
                %v614 = vld [vmem:[%s610 + $0x8] sm:$0xff]
                %615 = vst [vmem:[%s611 + $0x8] sm:$0xff] %v614
                %v616 = vld [vmem:[%s610 + $0x10] sm:$0xff]
                %617 = vst [vmem:[%s611 + $0x40] sm:$0xff] %v616
                %v618 = vld [vmem:[%s610 + $0x18] sm:$0xff]
                %619 = vst [vmem:[%s611 + $0x48] sm:$0xff] %v618
              $region84: #{class_conditional_batchnorm2d.1} parent=78 // loop_footer
                %s609 = sadd.s32 1, %s605
              $region85: #{class_conditional_batchnorm2d.1} parent=78 // loop_footer_branch
                %604 = sbr.rel target = $region81
              $region86: #{class_conditional_batchnorm2d.1} parent=78 // loop_exit
                _
            $region79: #{class_conditional_batchnorm2d.1} parent=74 // pred_fallthru
              _
            // Predicated region
            $region87: #{class_conditional_batchnorm2d.1} parent=74 // pred_check
              _
            $region88: #{class_conditional_batchnorm2d.1} parent=74 // pred_check_branch
              %621 = sbr.rel target = $region90
            $region89: #{class_conditional_batchnorm2d.1} parent=74 // pred_region
              _
            $region90: #{class_conditional_batchnorm2d.1} parent=74 // pred_fallthru
              _
          $region75: #{class_conditional_batchnorm2d.1} parent=70 // pred_fallthru
            _
          %622 = vnop
        $region71: #{class_conditional_batchnorm2d.1} parent=62 // pred_fallthru
          _
      $region63: #{class_conditional_batchnorm2d.1} parent=5 // pred_fallthru
        _
      %p623 = scmp.le.s32.totalorder 2, %s12
      // Predicated region
      $region91: #{class_conditional_batchnorm2d.1} parent=5 // pred_check
        %p624 = pneg %p623
      $region92: #{class_conditional_batchnorm2d.1} parent=5 // pred_check_branch
        %626 = sbr.rel (%p624) target = $region94
      $region93: #{class_conditional_batchnorm2d.1} parent=5 // pred_region
        %s627 = ssub.s32 %s12, 2
        // Predicated region
        $region95: #{class_conditional_batchnorm2d.1} parent=93 // pred_check
          %p628 = pneg %p192
        $region96: #{class_conditional_batchnorm2d.1} parent=93 // pred_check_branch
          %630 = sbr.rel (%p628) target = $region98
        $region97: #{class_conditional_batchnorm2d.1} parent=93 // pred_region
          %s631 = sand.u32 %s177, 1
          %s632 = sand.u32 %s177, 1
          %s633 = smul.addr %s632, 32
          %s634 = scalar_lea.vmem [#allocation3], %s633
        $region98: #{class_conditional_batchnorm2d.1} parent=93 // pred_fallthru
          _
      $region94: #{class_conditional_batchnorm2d.1} parent=5 // pred_fallthru
        _
    $region6: #{class_conditional_batchnorm2d.1} parent=1 // loop_footer
      %s16 = sadd.s32 1, %s12
    $region7: #{class_conditional_batchnorm2d.1} parent=1 // loop_footer_branch
      %11 = sbr.rel target = $region3
    $region8: #{class_conditional_batchnorm2d.1} parent=1 // loop_exit
      _

</llo_original>
